<compile_context>
chip_gen: v7x
topology: tpu7x:2x2x1
jax: 0.10.0
libtpu: 0.0.40
codegen_flags: <defaults>
</compile_context>

<pallas_src>
import jax
import jax.numpy as jnp
from jax.experimental import pallas as pl
from jax.experimental.pallas import tpu as pltpu


def time_embedding_kernel(x_ref, w1_ref, b1_ref, w2_ref, b2_ref, o_ref, h_ref):
    # x_ref : (B, n_embd)    bf16  resident (constant block index)
    # w1_ref: (n_embd, 4n)   bf16  resident
    # b1_ref: (1, 4n)        f32   resident
    # w2_ref: (4n, TN)       bf16  streamed column block
    # b2_ref: (1, TN)        f32   streamed
    # o_ref : (B, TN)              streamed output block
    # h_ref : (B, 4n)        bf16  VMEM scratch: silu(x@W1+b1), computed once

    # linear_1 + SiLU exactly once (first step of the column grid).
    @pl.when(pl.program_id(0) == 0)
    def _():
        h = jnp.dot(x_ref[...], w1_ref[...], preferred_element_type=jnp.float32)
        h = h + b1_ref[...]
        h = h * jax.nn.sigmoid(h)          # SiLU in f32 (VPU/EUP)
        h_ref[...] = h.astype(h_ref.dtype)

    # linear_2 on this column block of W2 (bf16 x bf16 -> f32 on the MXU).
    y = jnp.dot(h_ref[...], w2_ref[...], preferred_element_type=jnp.float32)
    y = y + b2_ref[...]
    o_ref[...] = y.astype(o_ref.dtype)


def _pick_tn(n_hidden, fits, max_tn=None):
    """Largest 128-multiple divisor of n_hidden (<= max_tn) whose blocks fit VMEM."""
    if n_hidden % 128 != 0:
        return n_hidden                      # full-width block (full dims are exempt)
    cap = n_hidden if max_tn is None else min(max_tn, n_hidden)
    tn = max(128, (cap // 128) * 128)
    while tn >= 128:
        if n_hidden % tn == 0 and fits(tn):
            return tn
        tn -= 128
    return 128


def time_embedding(x, w1, b1, w2, b2, *, max_tn=None):
    """x: (B, n_embd); w1: (n_embd, 4n); b1: (4n,); w2: (4n, 4n); b2: (4n,)."""
    B, n_embd = x.shape
    n_hidden = 4 * n_embd
    assert w1.shape == (n_embd, n_hidden)
    assert b1.shape == (n_hidden,)
    assert w2.shape == (n_hidden, n_hidden)
    assert b2.shape == (n_hidden,)

    out_dtype = x.dtype
    out_bytes = jnp.dtype(out_dtype).itemsize

    # bf16 weights / activations for the MXU; f32 biases and accumulation.
    x_bf = x.astype(jnp.bfloat16)
    w1_bf = w1.astype(jnp.bfloat16)
    w2_bf = w2.astype(jnp.bfloat16)
    b1_2d = b1.reshape(1, n_hidden).astype(jnp.float32)
    b2_2d = b2.reshape(1, n_hidden).astype(jnp.float32)

    # Pad batch to the bf16 native sublane tile (16) -> unmasked LHS / stores.
    B_pad = max(16, ((B + 15) // 16) * 16)
    if B_pad != B:
        x_bf = jnp.pad(x_bf, ((0, B_pad - B), (0, 0)))

    # ---- column tile selection (the kernel is HBM-bound on the W2 stream) ----
    def vmem_need(tn):
        resident = 2 * (B_pad * n_embd * 2          # x  (bf16), worst-case 2 bufs
                        + n_embd * n_hidden * 2     # W1 (bf16)
                        + n_hidden * 4)             # b1 (f32)
        h_scratch = B_pad * n_hidden * 2            # h  (bf16) scratch
        streamed = 2 * (n_hidden * tn * 2           # W2 tile (bf16), double-buffered
                        + tn * 4                    # b2 tile (f32)
                        + B_pad * tn * out_bytes)   # out tile
        return resident + h_scratch + streamed

    VMEM_BUDGET = 48 * 1024 * 1024                  # conservative: inside v7x's 64 MiB
    TN = _pick_tn(n_hidden, lambda tn: vmem_need(tn) <= VMEM_BUDGET, max_tn)
    grid = (n_hidden // TN,)

    # Scoped-VMEM limit covering the actual footprint (v5e default is 16 MiB),
    # clamped under v7x's 64 MiB physical VMEM.
    vmem_limit = int(min(max(vmem_need(TN) + 4 * 1024 * 1024, 32 * 1024 * 1024),
                         64 * 1024 * 1024))

    out = pl.pallas_call(
        time_embedding_kernel,
        out_shape=jax.ShapeDtypeStruct((B_pad, n_hidden), out_dtype),
        grid_spec=pltpu.PrefetchScalarGridSpec(
            num_scalar_prefetch=0,
            grid=grid,
            in_specs=[
                # Resident across the whole grid (constant block index).
                # (pipeline_mode=pl.Buffered(1) would halve their VMEM; skipped
                #  for maximum lowering portability -- TN search already budgets
                #  for the worst case.)
                pl.BlockSpec((B_pad, n_embd), lambda j: (0, 0)),
                pl.BlockSpec((n_embd, n_hidden), lambda j: (0, 0)),
                pl.BlockSpec((1, n_hidden), lambda j: (0, 0)),
                # Streamed, lane-dense column blocks of the dominant W2 payload.
                pl.BlockSpec((n_hidden, TN), lambda j: (0, j)),
                pl.BlockSpec((1, TN), lambda j: (0, j)),
            ],
            out_specs=pl.BlockSpec((B_pad, TN), lambda j: (0, j)),
            scratch_shapes=[pltpu.VMEM((B_pad, n_hidden), jnp.bfloat16)],
        ),
        compiler_params=pltpu.CompilerParams(
            # "arbitrary": h is written once at step 0 and reused by later
            # column blocks, so the axis must run sequentially.  With the
            # preferred full-width tile the grid is a single step anyway.
            dimension_semantics=("arbitrary",),
            vmem_limit_bytes=vmem_limit,
        ),
    )(x_bf, w1_bf, b1_2d, w2_bf, b2_2d)

    return out[:B]


def reference(x, w1, b1, w2, b2):
    h = x @ w1 + b1
    h = h * jax.nn.sigmoid(h)
    return h @ w2 + b2


if __name__ == "__main__":
    key = jax.random.PRNGKey(0)
    k_x, k_w1, k_b1, k_w2, k_b2 = jax.random.split(key, 5)

    batch = 2
    n_embd = 64          # small, consistent with TimeEmbedding(n_embd)
    n_hidden = 4 * n_embd

    x = jax.random.normal(k_x, (batch, n_embd), dtype=jnp.float32)

    # Deterministic parameters (PyTorch nn.Linear-style uniform bounds),
    # stored transposed as (in_features, out_features).
    bound1 = 1.0 / jnp.sqrt(n_embd)
    w1 = jax.random.uniform(k_w1, (n_embd, n_hidden), jnp.float32, -bound1, bound1)
    b1 = jax.random.uniform(k_b1, (n_hidden,), jnp.float32, -bound1, bound1)

    bound2 = 1.0 / jnp.sqrt(n_hidden)
    w2 = jax.random.uniform(k_w2, (n_hidden, n_hidden), jnp.float32, -bound2, bound2)
    b2 = jax.random.uniform(k_b2, (n_hidden,), jnp.float32, -bound2, bound2)

    ref = reference(x, w1, b1, w2, b2)

    # Preferred config: full-width W2 tile (grid = 1 step).
    out = jax.block_until_ready(time_embedding(x, w1, b1, w2, b2))
    assert out.shape == (batch, n_hidden)
    # bf16 weights/activations on the MXU -> small deviation vs the f32 reference.
    assert jnp.allclose(out, ref, atol=3e-2, rtol=3e-2), "mismatch vs reference"

    # Also exercise the multi-step column grid (h scratch reused across steps).
    out_tiled = jax.block_until_ready(time_embedding(x, w1, b1, w2, b2, max_tn=128))
    assert jnp.allclose(out_tiled, ref, atol=3e-2, rtol=3e-2), "tiled mismatch"

    print("KERNEL_OK")
</pallas_src>

<mosaic_0001>
module attributes {stable_mosaic.version = 11 : i64} {
  func.func @time_embedding_kernel(%arg0: i32, %arg1: memref<16x64xbf16, #tpu.memory_space<vmem>>, %arg2: memref<64x256xbf16, #tpu.memory_space<vmem>>, %arg3: memref<1x256xf32, #tpu.memory_space<vmem>>, %arg4: memref<256x256xbf16, #tpu.memory_space<vmem>>, %arg5: memref<1x256xf32, #tpu.memory_space<vmem>>, %arg6: memref<16x256xf32, #tpu.memory_space<vmem>>, %arg7: memref<16x256xbf16, #tpu.memory_space<vmem>>) attributes {dimension_semantics = [#tpu.dimension_semantics<arbitrary>], iteration_bounds = array<i64: 1>, scalar_prefetch = 0 : i64, scratch_operands = 1 : i64, tpu.core_type = #tpu.core_type<tc>, window_params = [{pipeline_mode = #tpu.pipeline_mode<synchronous>, transform_indices = @transform_0, window_bounds = array<i64: 16, 64>}, {pipeline_mode = #tpu.pipeline_mode<synchronous>, transform_indices = @transform_1, window_bounds = array<i64: 64, 256>}, {pipeline_mode = #tpu.pipeline_mode<synchronous>, transform_indices = @transform_2, window_bounds = array<i64: 1, 256>}, {transform_indices = @transform_3, window_bounds = array<i64: 256, 256>}, {transform_indices = @transform_4, window_bounds = array<i64: 1, 256>}, {transform_indices = @transform_5, window_bounds = array<i64: 16, 256>}]} {
    %c0_i32 = arith.constant 0 : i32
    %0 = arith.cmpi eq, %arg0, %c0_i32 : i32
    %1 = arith.extui %0 : i1 to i32
    %c0_i32_0 = arith.constant 0 : i32
    %2 = arith.cmpi ne, %1, %c0_i32_0 : i32
    scf.if %2 {
      %c0_8 = arith.constant 0 : index
      %c0_9 = arith.constant 0 : index
      %10 = vector.load %arg1[%c0_8, %c0_9] : memref<16x64xbf16, #tpu.memory_space<vmem>>, vector<16x64xbf16>
      %c0_10 = arith.constant 0 : index
      %c0_11 = arith.constant 0 : index
      %11 = vector.load %arg2[%c0_10, %c0_11] : memref<64x256xbf16, #tpu.memory_space<vmem>>, vector<64x256xbf16>
      %cst_12 = arith.constant dense<0.000000e+00> : vector<16x256xf32>
      %12 = tpu.matmul %10, %11, %cst_12 {dimension_numbers = #tpu.dot_dimension_numbers<[1], [0], [0], [1], [0, 0, 1, 1], [], []>} : vector<16x64xbf16>, vector<64x256xbf16>, vector<16x256xf32> -> vector<16x256xf32>
      %c0_13 = arith.constant 0 : index
      %c0_14 = arith.constant 0 : index
      %13 = vector.load %arg3[%c0_13, %c0_14] : memref<1x256xf32, #tpu.memory_space<vmem>>, vector<1x256xf32>
      %14 = vector.broadcast %13 : vector<1x256xf32> to vector<16x256xf32>
      %15 = arith.addf %12, %14 : vector<16x256xf32>
      %16 = arith.negf %15 : vector<16x256xf32>
      %17 = math.exp %16 : vector<16x256xf32>
      %cst_15 = arith.constant 1.000000e+00 : f32
      %18 = vector.broadcast %cst_15 : f32 to vector<16x256xf32>
      %19 = arith.addf %18, %17 : vector<16x256xf32>
      %20 = arith.divf %18, %19 : vector<16x256xf32>
      %21 = arith.mulf %15, %20 : vector<16x256xf32>
      %22 = arith.truncf %21 : vector<16x256xf32> to vector<16x256xbf16>
      %c0_16 = arith.constant 0 : index
      %c0_17 = arith.constant 0 : index
      %23 = vector.load %arg7[%c0_16, %c0_17] : memref<16x256xbf16, #tpu.memory_space<vmem>>, vector<16x256xbf16>
      tpu.vector_store %arg7[%c0_16, %c0_17], %22 {strides = array<i32>} : memref<16x256xbf16, #tpu.memory_space<vmem>>, vector<16x256xbf16>,
    } else {
    }
    %c0 = arith.constant 0 : index
    %c0_1 = arith.constant 0 : index
    %3 = vector.load %arg7[%c0, %c0_1] : memref<16x256xbf16, #tpu.memory_space<vmem>>, vector<16x256xbf16>
    %c0_2 = arith.constant 0 : index
    %c0_3 = arith.constant 0 : index
    %4 = vector.load %arg4[%c0_2, %c0_3] : memref<256x256xbf16, #tpu.memory_space<vmem>>, vector<256x256xbf16>
    %cst = arith.constant dense<0.000000e+00> : vector<16x256xf32>
    %5 = tpu.matmul %3, %4, %cst {dimension_numbers = #tpu.dot_dimension_numbers<[1], [0], [0], [1], [0, 0, 1, 1], [], []>} : vector<16x256xbf16>, vector<256x256xbf16>, vector<16x256xf32> -> vector<16x256xf32>
    %c0_4 = arith.constant 0 : index
    %c0_5 = arith.constant 0 : index
    %6 = vector.load %arg5[%c0_4, %c0_5] : memref<1x256xf32, #tpu.memory_space<vmem>>, vector<1x256xf32>
    %7 = vector.broadcast %6 : vector<1x256xf32> to vector<16x256xf32>
    %8 = arith.addf %5, %7 : vector<16x256xf32>
    %c0_6 = arith.constant 0 : index
    %c0_7 = arith.constant 0 : index
    %9 = vector.load %arg6[%c0_6, %c0_7] : memref<16x256xf32, #tpu.memory_space<vmem>>, vector<16x256xf32>
    tpu.vector_store %arg6[%c0_6, %c0_7], %8 {strides = array<i32>} : memref<16x256xf32, #tpu.memory_space<vmem>>, vector<16x256xf32>,
    return
  }
  func.func @transform_0(%arg0: i32) -> (i32, i32) {
    %c0_i32 = arith.constant 0 : i32
    %c0_i32_0 = arith.constant 0 : i32
    %c0_i32_1 = arith.constant 0 : i32
    return %c0_i32, %c0_i32_0 : i32, i32
  }
  func.func @transform_1(%arg0: i32) -> (i32, i32) {
    %c0_i32 = arith.constant 0 : i32
    %c0_i32_0 = arith.constant 0 : i32
    %c0_i32_1 = arith.constant 0 : i32
    return %c0_i32, %c0_i32_0 : i32, i32
  }
  func.func @transform_2(%arg0: i32) -> (i32, i32) {
    %c0_i32 = arith.constant 0 : i32
    %c0_i32_0 = arith.constant 0 : i32
    %c0_i32_1 = arith.constant 0 : i32
    return %c0_i32, %c0_i32_0 : i32, i32
  }
  func.func @transform_3(%arg0: i32) -> (i32, i32) {
    %c0_i32 = arith.constant 0 : i32
    %c0_i32_0 = arith.constant 0 : i32
    return %c0_i32, %arg0 : i32, i32
  }
  func.func @transform_4(%arg0: i32) -> (i32, i32) {
    %c0_i32 = arith.constant 0 : i32
    %c0_i32_0 = arith.constant 0 : i32
    return %c0_i32, %arg0 : i32, i32
  }
  func.func @transform_5(%arg0: i32) -> (i32, i32) {
    %c0_i32 = arith.constant 0 : i32
    %c0_i32_0 = arith.constant 0 : i32
    return %c0_i32, %arg0 : i32, i32
  }
}

</mosaic_0001>

<llo_original>
// kernel: tpu_custom_call.1
$region0: #{tpu_custom_call.1}
  #allocation0 [shape = 'u32[]', space=smem, size = 0x4, offset = 0x4, fixed_abs, tag = 'smem constant byte address 0x4 - core index']
  #allocation1 [shape = 'u32[144,128]{1,0:T(1,128)}', space=vmem, size = 0x12000, scoped, tag = 'internal scratch']
  #allocation2 [shape = 'bf16[16,256]{1,0:T(16,128)(2,1)}', space=vmem, size = 0x2000, scoped, tag = 'scratch operand']
  %s0 = inlined_call_operand.hbm [shape: bf16[16,64], index: 0, kind: input, shape index: {}]
  %s1 = inlined_call_operand.hbm [shape: bf16[64,256], index: 1, kind: input, shape index: {}]
  %s2 = inlined_call_operand.vmem [shape: f32[1,256], index: 2, kind: input, shape index: {}]
  %s3 = inlined_call_operand.hbm [shape: bf16[256,256], index: 3, kind: input, shape index: {}]
  %s4 = inlined_call_operand.vmem [shape: f32[1,256], index: 4, kind: input, shape index: {}]
  %s5 = inlined_call_operand.hbm [shape: f32[16,256], index: 5, kind: output, shape index: {}]
  %s6 = sld [smem:[#allocation0]]
  $region46: #{tpu_custom_call.1} parent=0
    _
  %s8 = ssub.s32 1, %s6
  %s9 = scalar_select 0, %s8, %s6
  $region1: #{tpu_custom_call.1} parent=0
    #allocation3 [shape = 'u8[4096]{0}', space=vmem, size = 0x1000, scoped, tag = 'input window, operand 0, single buffered']
    #allocation4 [shape = 's32[1]{0}', space=sflag, size = 0x4, scoped, tag = 'scoped memory for tpu_custom_call.1']
    #allocation5 [shape = 's32[1]{0}', space=sflag, size = 0x4, scoped, tag = 'scoped memory for tpu_custom_call.1']
    #allocation6 [shape = 'u8[32768]{0}', space=vmem, size = 0x8000, scoped, tag = 'input window, operand 1, single buffered']
    #allocation7 [shape = 's32[1]{0}', space=sflag, size = 0x4, scoped, tag = 'scoped memory for tpu_custom_call.1']
    #allocation8 [shape = 'u8[131072]{0}', space=vmem, size = 0x20000, scoped, tag = 'input window, operand 3, single buffered']
    #allocation9 [shape = 'u8[16384]{0}', space=vmem, size = 0x4000, scoped, tag = 'output window, operand 0, single buffered']
    %10 = vsyncpa [#allocation4], 0
    %11 = vsyncpa [#allocation7], 0
    %12 = vsyncpa [#allocation5], 0
    // Predicated region
    $region2: #{tpu_custom_call.1} parent=1 // pred_check
      _
    $region3: #{tpu_custom_call.1} parent=1 // pred_check_branch
      %14 = sbr.rel (0) target = $region5
    $region4: #{tpu_custom_call.1} parent=1 // pred_region
      %s16 = ssub.s32 128, 128
      %17 = vsyncadd [#allocation4], %s16
      %s18 = sshll.u32 [#allocation3], 4
      %s19 = int_to_ptr.vmem [resolvable:$true] %s18
      %24 = dma.hbm_to_vmem [thread:$0]  %s0, 128, %s19, [#allocation4], 64, 64, 4
    $region5: #{tpu_custom_call.1} parent=1 // pred_fallthru
      _
    // Predicated region
    $region6: #{tpu_custom_call.1} parent=1 // pred_check
      _
    $region7: #{tpu_custom_call.1} parent=1 // pred_check_branch
      %26 = sbr.rel (0) target = $region9
    $region8: #{tpu_custom_call.1} parent=1 // pred_region
      %s28 = ssub.s32 1024, 1024
      %29 = vsyncadd [#allocation7], %s28
      %s30 = sshll.u32 [#allocation6], 4
      %s31 = int_to_ptr.vmem [resolvable:$true] %s30
      %36 = dma.hbm_to_vmem [thread:$0]  %s1, 1024, %s31, [#allocation7], 128, 128, 8
    $region9: #{tpu_custom_call.1} parent=1 // pred_fallthru
      _
    // Predicated region
    $region10: #{tpu_custom_call.1} parent=1 // pred_check
      _
    $region11: #{tpu_custom_call.1} parent=1 // pred_check_branch
      %38 = sbr.rel (0) target = $region13
    $region12: #{tpu_custom_call.1} parent=1 // pred_region
      _
    $region13: #{tpu_custom_call.1} parent=1 // pred_fallthru
      _
    // Predicated region
    $region14: #{tpu_custom_call.1} parent=1 // pred_check
      _
    $region15: #{tpu_custom_call.1} parent=1 // pred_check_branch
      %40 = sbr.rel (0) target = $region17
    $region16: #{tpu_custom_call.1} parent=1 // pred_region
      %s42 = ssub.s32 4096, 4096
      %43 = vsyncadd [#allocation7], %s42
      %s44 = sshll.u32 [#allocation8], 4
      %s45 = int_to_ptr.vmem [resolvable:$true] %s44
      %50 = dma.hbm_to_vmem [thread:$0]  %s3, 4096, %s45, [#allocation7], 128, 128, 8
    $region17: #{tpu_custom_call.1} parent=1 // pred_fallthru
      _
    // Predicated region
    $region18: #{tpu_custom_call.1} parent=1 // pred_check
      _
    $region19: #{tpu_custom_call.1} parent=1 // pred_check_branch
      %52 = sbr.rel (0) target = $region21
    $region20: #{tpu_custom_call.1} parent=1 // pred_region
      _
    $region21: #{tpu_custom_call.1} parent=1 // pred_fallthru
      _
    // Predicated region
    $region22: #{tpu_custom_call.1} parent=1 // pred_check
      _
    $region23: #{tpu_custom_call.1} parent=1 // pred_check_branch
      %54 = sbr.rel (0) target = $region25
    $region24: #{tpu_custom_call.1} parent=1 // pred_region
      %55 = dma.done [#allocation4], 128
    $region25: #{tpu_custom_call.1} parent=1 // pred_fallthru
      _
    // Predicated region
    $region26: #{tpu_custom_call.1} parent=1 // pred_check
      _
    $region27: #{tpu_custom_call.1} parent=1 // pred_check_branch
      %57 = sbr.rel (0) target = $region29
    $region28: #{tpu_custom_call.1} parent=1 // pred_region
      %58 = dma.done [#allocation7], 1024
    $region29: #{tpu_custom_call.1} parent=1 // pred_fallthru
      _
    // Predicated region
    $region30: #{tpu_custom_call.1} parent=1 // pred_check
      _
    $region31: #{tpu_custom_call.1} parent=1 // pred_check_branch
      %60 = sbr.rel (0) target = $region33
    $region32: #{tpu_custom_call.1} parent=1 // pred_region
      %61 = dma.done [#allocation7], 4096
    $region33: #{tpu_custom_call.1} parent=1 // pred_fallthru
      _
    %p63 = scmp.eq.s32.totalorder 0, 0
    // Predicated region
    $region34: #{tpu_custom_call.1} parent=1 // pred_check
      %p64 = pneg %p63
    $region35: #{tpu_custom_call.1} parent=1 // pred_check_branch
      %66 = sbr.rel (%p64) target = $region37
    $region36: #{tpu_custom_call.1} parent=1 // pred_region
      %v67 = vld [vmem:[#allocation3] sm:$0xf]
      %v68 = vld [vmem:[#allocation3 + $0x4] sm:$0xf]
      %v69 = vld [vmem:[#allocation6] sm:$0xff]
      %v70 = vld [vmem:[#allocation6 + $0x8] sm:$0xff]
      %v71 = vld [vmem:[#allocation6 + $0x10] sm:$0xff]
      %v72 = vld [vmem:[#allocation6 + $0x18] sm:$0xff]
      %v73 = vld [vmem:[#allocation6 + $0x20] sm:$0xff]
      %v74 = vld [vmem:[#allocation6 + $0x28] sm:$0xff]
      %v75 = vld [vmem:[#allocation6 + $0x30] sm:$0xff]
      %v76 = vld [vmem:[#allocation6 + $0x38] sm:$0xff]
      %v77 = vld [vmem:[%s2] sm:$0x3]
      %v79 = vlaneseq
      %v80 = vshrl.u32 %v79, 7
      %v81 = vsub.s32 0, %v80
      %v82 = vrot.slane %v77, %v81
      %v83 = vlaneseq
      %v84 = vshrl.u32 %v83, 7
      %v85 = vsub.s32 1, %v84
      %v86 = vrot.slane %v77, %v85
      %v91 = vunpack.c.l.b16 %v67
      %v92 = vunpack.c.l.b16 %v68
      %v93 = vpack.c.b16 %v92, %v91
      %v102 = vunpack.c.l.b16 %v69
      %v103 = vunpack.c.h.b16 %v69
      %v104 = vunpack.c.l.b16 %v70
      %v105 = vunpack.c.h.b16 %v70
      %v106 = vunpack.c.l.b16 %v71
      %v107 = vunpack.c.h.b16 %v71
      %v108 = vunpack.c.l.b16 %v72
      %v109 = vunpack.c.h.b16 %v72
      %v110 = vunpack.c.l.b16 %v73
      %v111 = vunpack.c.h.b16 %v73
      %v112 = vunpack.c.l.b16 %v74
      %v113 = vunpack.c.h.b16 %v74
      %v114 = vunpack.c.l.b16 %v75
      %v115 = vunpack.c.h.b16 %v75
      %v116 = vunpack.c.l.b16 %v76
      %v117 = vunpack.c.h.b16 %v76
      %v118 = vpack.c.b16 %v104, %v102
      %v119 = vpack.c.b16 %v105, %v103
      %v120 = vpack.c.b16 %v108, %v106
      %v121 = vpack.c.b16 %v109, %v107
      %v122 = vpack.c.b16 %v112, %v110
      %v123 = vpack.c.b16 %v113, %v111
      %v124 = vpack.c.b16 %v116, %v114
      %v125 = vpack.c.b16 %v117, %v115
      %vm134 = vcmask 523264
      %v136 = vsel %vm134, %v93, 0
      %138 = vmatprep.subr.bf16.mxu0 %v119
      %139 = vmatpush1.bf16.msra.mxu0 %v118
      %140 = vmatprep.subr.bf16.mxu0 %v121
      %141 = vmatpush1.bf16.msra.mxu0 %v120
      %142 = vmatprep.subr.bf16.mxu0 %v123
      %143 = vmatpush1.bf16.msra.mxu0 %v122
      %144 = vmatprep.subr.bf16.mxu0 %v125
      %145 = vmatpush1.bf16.msra.mxu0 %v124
      %146 = vmatprep.subr.bf16.mxu0 0
      %147 = vmatpush1.bf16.msra.mxu0 0
      %148 = vmatprep.subr.bf16.mxu0 0
      %149 = vmatpush1.bf16.msra.mxu0 0
      %150 = vmatprep.subr.bf16.mxu0 0
      %151 = vmatpush1.bf16.msra.mxu0 0
      %152 = vmatprep.subr.bf16.mxu0 0
      %153 = vmatpush1.bf16.msra.mxu0 0
      %154 = vmatprep.subr.bf16.mxu0 0
      %155 = vmatpush1.bf16.msra.mxu0 0
      %156 = vmatprep.subr.bf16.mxu0 0
      %157 = vmatpush1.bf16.msra.mxu0 0
      %158 = vmatprep.subr.bf16.mxu0 0
      %159 = vmatpush1.bf16.msra.mxu0 0
      %160 = vmatprep.subr.bf16.mxu0 0
      %161 = vmatpush1.bf16.msra.mxu0 0
      %162 = vmatprep.subr.bf16.mxu0 0
      %163 = vmatpush1.bf16.msra.mxu0 0
      %164 = vmatprep.subr.bf16.mxu0 0
      %165 = vmatpush1.bf16.msra.mxu0 0
      %166 = vmatprep.subr.bf16.mxu0 0
      %167 = vmatpush1.bf16.msra.mxu0 0
      %168 = vmatprep.subr.bf16.mxu0 0
      %169 = vmatpush1.bf16.msra.mxu0 0
      %170 = vmatprep.mubr.bf16.mxu0 0
      %171 = vmatmul.mubr.bf16.gmra.mrb[0].mxu0 %v136
      %v172 = vpop.f32.mrb[0].mxu0
      %v173 = vadd.f32 %v82, %v172
      %v174 = vpop.f32.mrb[0].mxu0
      %v175 = vadd.f32 %v86, %v174
      %v176 = vpop.f32.mrb[0].mxu0
      %v177 = vadd.f32 %v82, %v176
      %v178 = vpop.f32.mrb[0].mxu0
      %v179 = vadd.f32 %v86, %v178
      %180 = vdwg.mxu0
      %v181 = vxor.u32 %v173, 2147483648
      %v182 = vxor.u32 %v175, 2147483648
      %v183 = vxor.u32 %v177, 2147483648
      %v184 = vxor.u32 %v179, 2147483648
      %v185 = vmul.f32 %v181, 1.442695
      %v186 = vpow.pop %v185
      %v187 = vmul.f32 %v182, 1.442695
      %v188 = vpow.pop %v187
      %v189 = vmul.f32 %v183, 1.442695
      %v190 = vpow.pop %v189
      %v191 = vmul.f32 %v184, 1.442695
      %v192 = vpow.pop %v191
      %v193 = vadd.f32 %v186, 1.0
      %v194 = vadd.f32 %v188, 1.0
      %v195 = vadd.f32 %v190, 1.0
      %v196 = vadd.f32 %v192, 1.0
      %v197 = vrcp.pop %v193
      %v198 = vmul.f32 1.0, %v197
      %v199 = vrcp.pop %v194
      %v200 = vmul.f32 1.0, %v199
      %v201 = vrcp.pop %v195
      %v202 = vmul.f32 1.0, %v201
      %v203 = vrcp.pop %v196
      %v204 = vmul.f32 1.0, %v203
      %v205 = vmul.f32 %v173, %v198
      %v206 = vmul.f32 %v175, %v200
      %v207 = vmul.f32 %v177, %v202
      %v208 = vmul.f32 %v179, %v204
      %v209 = vpack.c.bf16 %v207, %v205
      %v210 = vpack.c.bf16 %v208, %v206
      %211 = vst [vmem:[#allocation2] sm:$0xff] %v209
      %212 = vst [vmem:[#allocation2 + $0x8] sm:$0xff] %v210
    $region37: #{tpu_custom_call.1} parent=1 // pred_fallthru
      _
    %v213 = vld [vmem:[#allocation2] sm:$0xff]
    %v214 = vld [vmem:[#allocation2 + $0x8] sm:$0xff]
    %v215 = vld [vmem:[#allocation8] sm:$0xff]
    %v216 = vld [vmem:[#allocation8 + $0x8] sm:$0xff]
    %v217 = vld [vmem:[#allocation8 + $0x10] sm:$0xff]
    %v218 = vld [vmem:[#allocation8 + $0x18] sm:$0xff]
    %v219 = vld [vmem:[#allocation8 + $0x20] sm:$0xff]
    %v220 = vld [vmem:[#allocation8 + $0x28] sm:$0xff]
    %v221 = vld [vmem:[#allocation8 + $0x30] sm:$0xff]
    %v222 = vld [vmem:[#allocation8 + $0x38] sm:$0xff]
    %v223 = vld [vmem:[#allocation8 + $0x40] sm:$0xff]
    %v224 = vld [vmem:[#allocation8 + $0x48] sm:$0xff]
    %v225 = vld [vmem:[#allocation8 + $0x50] sm:$0xff]
    %v226 = vld [vmem:[#allocation8 + $0x58] sm:$0xff]
    %v227 = vld [vmem:[#allocation8 + $0x60] sm:$0xff]
    %v228 = vld [vmem:[#allocation8 + $0x68] sm:$0xff]
    %v229 = vld [vmem:[#allocation8 + $0x70] sm:$0xff]
    %v230 = vld [vmem:[#allocation8 + $0x78] sm:$0xff]
    %v231 = vld [vmem:[#allocation8 + $0x80] sm:$0xff]
    %v232 = vld [vmem:[#allocation8 + $0x88] sm:$0xff]
    %v233 = vld [vmem:[#allocation8 + $0x90] sm:$0xff]
    %v234 = vld [vmem:[#allocation8 + $0x98] sm:$0xff]
    %v235 = vld [vmem:[#allocation8 + $0xa0] sm:$0xff]
    %v236 = vld [vmem:[#allocation8 + $0xa8] sm:$0xff]
    %v237 = vld [vmem:[#allocation8 + $0xb0] sm:$0xff]
    %v238 = vld [vmem:[#allocation8 + $0xb8] sm:$0xff]
    %v239 = vld [vmem:[#allocation8 + $0xc0] sm:$0xff]
    %v240 = vld [vmem:[#allocation8 + $0xc8] sm:$0xff]
    %v241 = vld [vmem:[#allocation8 + $0xd0] sm:$0xff]
    %v242 = vld [vmem:[#allocation8 + $0xd8] sm:$0xff]
    %v243 = vld [vmem:[#allocation8 + $0xe0] sm:$0xff]
    %v244 = vld [vmem:[#allocation8 + $0xe8] sm:$0xff]
    %v245 = vld [vmem:[#allocation8 + $0xf0] sm:$0xff]
    %v246 = vld [vmem:[#allocation8 + $0xf8] sm:$0xff]
    %v247 = vld [vmem:[%s4] sm:$0x3]
    %v249 = vlaneseq
    %v250 = vshrl.u32 %v249, 7
    %v251 = vsub.s32 0, %v250
    %v252 = vrot.slane %v247, %v251
    %v253 = vlaneseq
    %v254 = vshrl.u32 %v253, 7
    %v255 = vsub.s32 1, %v254
    %v256 = vrot.slane %v247, %v255
    %v291 = vunpack.c.l.b16 %v215
    %v292 = vunpack.c.h.b16 %v215
    %v293 = vunpack.c.l.b16 %v216
    %v294 = vunpack.c.h.b16 %v216
    %v295 = vunpack.c.l.b16 %v217
    %v296 = vunpack.c.h.b16 %v217
    %v297 = vunpack.c.l.b16 %v218
    %v298 = vunpack.c.h.b16 %v218
    %v299 = vunpack.c.l.b16 %v219
    %v300 = vunpack.c.h.b16 %v219
    %v301 = vunpack.c.l.b16 %v220
    %v302 = vunpack.c.h.b16 %v220
    %v303 = vunpack.c.l.b16 %v221
    %v304 = vunpack.c.h.b16 %v221
    %v305 = vunpack.c.l.b16 %v222
    %v306 = vunpack.c.h.b16 %v222
    %v307 = vunpack.c.l.b16 %v223
    %v308 = vunpack.c.h.b16 %v223
    %v309 = vunpack.c.l.b16 %v224
    %v310 = vunpack.c.h.b16 %v224
    %v311 = vunpack.c.l.b16 %v225
    %v312 = vunpack.c.h.b16 %v225
    %v313 = vunpack.c.l.b16 %v226
    %v314 = vunpack.c.h.b16 %v226
    %v315 = vunpack.c.l.b16 %v227
    %v316 = vunpack.c.h.b16 %v227
    %v317 = vunpack.c.l.b16 %v228
    %v318 = vunpack.c.h.b16 %v228
    %v319 = vunpack.c.l.b16 %v229
    %v320 = vunpack.c.h.b16 %v229
    %v321 = vunpack.c.l.b16 %v230
    %v322 = vunpack.c.h.b16 %v230
    %v323 = vunpack.c.l.b16 %v231
    %v324 = vunpack.c.h.b16 %v231
    %v325 = vunpack.c.l.b16 %v232
    %v326 = vunpack.c.h.b16 %v232
    %v327 = vunpack.c.l.b16 %v233
    %v328 = vunpack.c.h.b16 %v233
    %v329 = vunpack.c.l.b16 %v234
    %v330 = vunpack.c.h.b16 %v234
    %v331 = vunpack.c.l.b16 %v235
    %v332 = vunpack.c.h.b16 %v235
    %v333 = vunpack.c.l.b16 %v236
    %v334 = vunpack.c.h.b16 %v236
    %v335 = vunpack.c.l.b16 %v237
    %v336 = vunpack.c.h.b16 %v237
    %v337 = vunpack.c.l.b16 %v238
    %v338 = vunpack.c.h.b16 %v238
    %v339 = vunpack.c.l.b16 %v239
    %v340 = vunpack.c.h.b16 %v239
    %v341 = vunpack.c.l.b16 %v240
    %v342 = vunpack.c.h.b16 %v240
    %v343 = vunpack.c.l.b16 %v241
    %v344 = vunpack.c.h.b16 %v241
    %v345 = vunpack.c.l.b16 %v242
    %v346 = vunpack.c.h.b16 %v242
    %v347 = vunpack.c.l.b16 %v243
    %v348 = vunpack.c.h.b16 %v243
    %v349 = vunpack.c.l.b16 %v244
    %v350 = vunpack.c.h.b16 %v244
    %v351 = vunpack.c.l.b16 %v245
    %v352 = vunpack.c.h.b16 %v245
    %v353 = vunpack.c.l.b16 %v246
    %v354 = vunpack.c.h.b16 %v246
    %v355 = vpack.c.b16 %v293, %v291
    %v356 = vpack.c.b16 %v294, %v292
    %v357 = vpack.c.b16 %v297, %v295
    %v358 = vpack.c.b16 %v298, %v296
    %v359 = vpack.c.b16 %v301, %v299
    %v360 = vpack.c.b16 %v302, %v300
    %v361 = vpack.c.b16 %v305, %v303
    %v362 = vpack.c.b16 %v306, %v304
    %v363 = vpack.c.b16 %v309, %v307
    %v364 = vpack.c.b16 %v310, %v308
    %v365 = vpack.c.b16 %v313, %v311
    %v366 = vpack.c.b16 %v314, %v312
    %v367 = vpack.c.b16 %v317, %v315
    %v368 = vpack.c.b16 %v318, %v316
    %v369 = vpack.c.b16 %v321, %v319
    %v370 = vpack.c.b16 %v322, %v320
    %v371 = vpack.c.b16 %v325, %v323
    %v372 = vpack.c.b16 %v326, %v324
    %v373 = vpack.c.b16 %v329, %v327
    %v374 = vpack.c.b16 %v330, %v328
    %v375 = vpack.c.b16 %v333, %v331
    %v376 = vpack.c.b16 %v334, %v332
    %v377 = vpack.c.b16 %v337, %v335
    %v378 = vpack.c.b16 %v338, %v336
    %v379 = vpack.c.b16 %v341, %v339
    %v380 = vpack.c.b16 %v342, %v340
    %v381 = vpack.c.b16 %v345, %v343
    %v382 = vpack.c.b16 %v346, %v344
    %v383 = vpack.c.b16 %v349, %v347
    %v384 = vpack.c.b16 %v350, %v348
    %v385 = vpack.c.b16 %v353, %v351
    %v386 = vpack.c.b16 %v354, %v352
    %419 = vmatprep.subr.bf16.mxu0 %v356
    %420 = vmatpush1.bf16.msra.mxu0 %v355
    %421 = vmatprep.subr.bf16.mxu0 %v358
    %422 = vmatpush1.bf16.msra.mxu0 %v357
    %423 = vmatprep.subr.bf16.mxu0 %v360
    %424 = vmatpush1.bf16.msra.mxu0 %v359
    %425 = vmatprep.subr.bf16.mxu0 %v362
    %426 = vmatpush1.bf16.msra.mxu0 %v361
    %427 = vmatprep.subr.bf16.mxu0 %v364
    %428 = vmatpush1.bf16.msra.mxu0 %v363
    %429 = vmatprep.subr.bf16.mxu0 %v366
    %430 = vmatpush1.bf16.msra.mxu0 %v365
    %431 = vmatprep.subr.bf16.mxu0 %v368
    %432 = vmatpush1.bf16.msra.mxu0 %v367
    %433 = vmatprep.subr.bf16.mxu0 %v370
    %434 = vmatpush1.bf16.msra.mxu0 %v369
    %435 = vmatprep.subr.bf16.mxu0 %v372
    %436 = vmatpush1.bf16.msra.mxu0 %v371
    %437 = vmatprep.subr.bf16.mxu0 %v374
    %438 = vmatpush1.bf16.msra.mxu0 %v373
    %439 = vmatprep.subr.bf16.mxu0 %v376
    %440 = vmatpush1.bf16.msra.mxu0 %v375
    %441 = vmatprep.subr.bf16.mxu0 %v378
    %442 = vmatpush1.bf16.msra.mxu0 %v377
    %443 = vmatprep.subr.bf16.mxu0 %v380
    %444 = vmatpush1.bf16.msra.mxu0 %v379
    %445 = vmatprep.subr.bf16.mxu0 %v382
    %446 = vmatpush1.bf16.msra.mxu0 %v381
    %447 = vmatprep.subr.bf16.mxu0 %v384
    %448 = vmatpush1.bf16.msra.mxu0 %v383
    %449 = vmatprep.subr.bf16.mxu0 %v386
    %450 = vmatpush1.bf16.msra.mxu0 %v385
    %451 = vmatprep.mubr.bf16.mxu0 %v214
    %452 = vmatmul.mubr.bf16.gmra.mrb[0].mxu0 %v213
    %v453 = vpop.f32.mrb[0].mxu0
    %v454 = vadd.f32 %v252, %v453
    %v455 = vpop.f32.mrb[0].mxu0
    %v456 = vadd.f32 %v256, %v455
    %v457 = vpop.f32.mrb[0].mxu0
    %v458 = vadd.f32 %v252, %v457
    %v459 = vpop.f32.mrb[0].mxu0
    %v460 = vadd.f32 %v256, %v459
    %461 = vdwg.mxu0
    %462 = vst [vmem:[#allocation9] sm:$0xff] %v454
    %463 = vst [vmem:[#allocation9 + $0x8] sm:$0xff] %v456
    %464 = vst [vmem:[#allocation9 + $0x10] sm:$0xff] %v458
    %465 = vst [vmem:[#allocation9 + $0x18] sm:$0xff] %v460
    // Predicated region
    $region38: #{tpu_custom_call.1} parent=1 // pred_check
      _
    $region39: #{tpu_custom_call.1} parent=1 // pred_check_branch
      %467 = sbr.rel (0) target = $region41
    $region40: #{tpu_custom_call.1} parent=1 // pred_region
      %s469 = ssub.s32 512, 512
      %470 = vsyncadd [#allocation5], %s469
      %s471 = sshll.u32 [#allocation9], 4
      %s472 = int_to_ptr.vmem [resolvable:$true] %s471
      %477 = dma.vmem_to_hbm [thread:$0]  %s472, 512, %s5, [#allocation5], 256, 256, 16
    $region41: #{tpu_custom_call.1} parent=1 // pred_fallthru
      _
    // Predicated region
    $region42: #{tpu_custom_call.1} parent=1 // pred_check
      _
    $region43: #{tpu_custom_call.1} parent=1 // pred_check_branch
      %479 = sbr.rel (0) target = $region45
    $region44: #{tpu_custom_call.1} parent=1 // pred_region
      %480 = dma.done [#allocation5], 512
    $region45: #{tpu_custom_call.1} parent=1 // pred_fallthru
      _
    %481 = vsyncpa [#allocation4], 1
    %482 = vsyncpa [#allocation7], 1
    %483 = vsyncpa [#allocation5], 1

</llo_original>
